<compile_context>
chip_gen: v7x
topology: tpu7x:2x2x1
jax: 0.10.0
libtpu: 0.0.40
codegen_flags: <defaults>
</compile_context>

<pallas_src>
import functools

import jax
import jax.numpy as jnp
from jax import lax
from jax.experimental import pallas as pl
from jax.experimental.pallas import tpu as pltpu


_LANE = 128      # lane width (last dim)
_SUBLANE = 16    # sublane multiple safe for both f32 (8) and bf16 (16)


def _round_up(x, m):
    return (x + m - 1) // m * m


def _cdiv(a, b):
    return (a + b - 1) // b


# ----------------------------------------------------------------------------
# Kernel
# ----------------------------------------------------------------------------
def policy_net_kernel(x_ref, w_in_ref, b_in_ref, w_h_ref, b_h_ref,
                      w_out_ref, b_out_ref, o_ref, *,
                      num_layers, inv_action_scale, action_scale):
    compute_dtype = w_in_ref.dtype

    # Per-tile cast of the streamed input (no wrapper-side HBM pad/cast pass).
    x = x_ref[...].astype(compute_dtype)

    # Input layer + ReLU.  MXU matmul with f32 accumulation; bias/ReLU in f32.
    h = jnp.dot(x, w_in_ref[...],
                preferred_element_type=jnp.float32) + b_in_ref[...]
    h = jnp.maximum(h, 0.0)

    def layer(l, h):
        hn = jnp.dot(h.astype(compute_dtype), w_h_ref[l],
                     preferred_element_type=jnp.float32) + b_h_ref[l]
        return jnp.maximum(hn, 0.0)

    if num_layers > 0:
        if num_layers <= 32:
            # Static unroll keeps back-to-back MXU pushes dense (h lives in
            # VMEM, so vreg pressure is not a concern).
            for l in range(num_layers):
                h = layer(l, h)
        else:
            # Only for absurd depths: bound compile time with a visible loop.
            h = lax.fori_loop(0, num_layers, layer, h)

    out = jnp.dot(h.astype(compute_dtype), w_out_ref[...],
                  preferred_element_type=jnp.float32) + b_out_ref[...]
    # tanh(out / s) * s  ==  tanh(out * (1/s)) * s, with 1/s precomputed.
    o_ref[...] = (jnp.tanh(out * inv_action_scale) * action_scale).astype(o_ref.dtype)


# ----------------------------------------------------------------------------
# Parameter init (mimics nn.Linear default init, PyTorch (out, in) layout)
# ----------------------------------------------------------------------------
def init_policy_params(key, input_size, output_size, num_layers, hidden_size):
    keys = jax.random.split(key, 2 * (num_layers + 2))

    def linear(kw, kb, fan_in, fan_out):
        bound = 1.0 / float(fan_in) ** 0.5
        w = jax.random.uniform(kw, (fan_out, fan_in), jnp.float32, -bound, bound)
        b = jax.random.uniform(kb, (fan_out,), jnp.float32, -bound, bound)
        return w, b

    w_in, b_in = linear(keys[0], keys[1], input_size, hidden_size)
    w_hs, b_hs = [], []
    for i in range(num_layers):
        w, b = linear(keys[2 + 2 * i], keys[3 + 2 * i], hidden_size, hidden_size)
        w_hs.append(w)
        b_hs.append(b)
    w_out, b_out = linear(keys[2 + 2 * num_layers], keys[3 + 2 * num_layers],
                          hidden_size, output_size)

    return {
        "w_in": w_in, "b_in": b_in,
        "w_h": (jnp.stack(w_hs, axis=0) if num_layers > 0
                else jnp.zeros((0, hidden_size, hidden_size), jnp.float32)),
        "b_h": (jnp.stack(b_hs, axis=0) if num_layers > 0
                else jnp.zeros((0, hidden_size), jnp.float32)),
        "w_out": w_out, "b_out": b_out,
    }


# ----------------------------------------------------------------------------
# One-time weight preparation: transpose to (in, out), pad only the hidden
# (lane) dim, cast matmul operands to compute_dtype (biases stay f32).
# Input feature dim (K of the first layer) and the output action dim stay
# unpadded -- blocks whose last-two dims equal the full array dims are legal,
# and this keeps HBM writeback / wrapper slicing away.
# ----------------------------------------------------------------------------
def prepare_policy_params(params, compute_dtype=jnp.bfloat16):
    w_in, b_in = params["w_in"], params["b_in"]        # (H, I), (H,)
    w_h, b_h = params["w_h"], params["b_h"]            # (L, H, H), (L, H)
    w_out, b_out = params["w_out"], params["b_out"]    # (O, H), (O,)

    H, I = w_in.shape
    O = w_out.shape[0]
    L = w_h.shape[0]

    # Full-width MXU tiles on v6e/v7x (256x256) when hidden is large enough;
    # 128 otherwise (also the right pad for v5e's 128x128 MXUs).
    hidden_align = 256 if H >= 256 else _LANE
    Hp = _round_up(H, hidden_align)
    Lp = max(L, 1)   # never hand zero-extent arrays to pallas_call

    w_in_t = jnp.pad(w_in.T, ((0, 0), (0, Hp - H))).astype(compute_dtype)      # (I, Hp)
    b_in_r = jnp.pad(b_in, (0, Hp - H))[None, :].astype(jnp.float32)           # (1, Hp)

    w_h_t = jnp.transpose(w_h, (0, 2, 1))                                      # in -> out
    w_h_t = jnp.pad(w_h_t, ((0, Lp - L), (0, Hp - H), (0, Hp - H))
                    ).astype(compute_dtype)                                    # (Lp, Hp, Hp)
    b_h_r = jnp.pad(b_h, ((0, Lp - L), (0, Hp - H)))[:, None, :].astype(jnp.float32)

    w_out_t = jnp.pad(w_out.T, ((0, Hp - H), (0, 0))).astype(compute_dtype)    # (Hp, O)
    b_out_r = b_out[None, :].astype(jnp.float32)                               # (1, O)

    return {
        "w_in": w_in_t, "b_in": b_in_r,
        "w_h": w_h_t, "b_h": b_h_r,
        "w_out": w_out_t, "b_out": b_out_r,
        "num_layers": L,
        "input_size": I, "output_size": O,
        "hidden_padded": Hp,
        "compute_dtype": compute_dtype,
    }


# ----------------------------------------------------------------------------
# Forward wrapper
# ----------------------------------------------------------------------------
def policy_net_forward(x, prepped, action_scale=1.0, batch_tile=512):
    B, I = x.shape
    assert I == prepped["input_size"]
    Hp = prepped["hidden_padded"]
    O = prepped["output_size"]
    L = prepped["num_layers"]
    compute_dtype = prepped["compute_dtype"]

    w_in, b_in = prepped["w_in"], prepped["b_in"]
    w_h, b_h = prepped["w_h"], prepped["b_h"]
    w_out, b_out = prepped["w_out"], prepped["b_out"]

    # ---- Batch tiling: stream x directly, ragged last block handled by the
    # pipeline (no jnp.pad of x, no output slice). ----
    TB = _round_up(batch_tile, _SUBLANE)
    if B <= TB:
        if B >= 2 * _SUBLANE:
            # Guarantee >= 2 grid steps so v7x's second TensorCore gets work.
            TB = _round_up(_cdiv(B, 2), _SUBLANE)
        else:
            TB = B   # tiny batch: single block, dims equal full array dims
    grid_b = _cdiv(B, TB)

    kernel = functools.partial(
        policy_net_kernel,
        num_layers=L,
        inv_action_scale=float(1.0 / action_scale),
        action_scale=float(action_scale),
    )

    # ---- VMEM budget: single-buffered weights + double-buffered x/out tiles
    # + in-flight activations.  Cap at 56 MiB (headroom on v7x's 64 MiB/TC).
    w_item = jnp.dtype(compute_dtype).itemsize
    weight_bytes = (w_in.size + w_h.size + w_out.size) * w_item \
        + (b_in.size + b_h.size + b_out.size) * 4
    io_bytes = 2 * TB * (I * x.dtype.itemsize + O * 4)
    act_bytes = 4 * TB * Hp * 4
    needed = weight_bytes + io_bytes + act_bytes
    vmem_limit = int(min(max(int(needed * 1.5) + (8 << 20), 32 << 20), 56 << 20))
    # TODO(synk): when single-buffered weight bytes exceed ~50% of VMEM (v7x:
    # 64 MiB/TC), switch to a layer-streamed pipeline (arbitrary grid axis over
    # layers with Buffered weight blocks + a VMEM activation accumulator)
    # instead of letting the compiler shrink tiles or OOM.

    flops = 2 * B * (I * Hp + L * Hp * Hp + Hp * O)
    bytes_accessed = x.size * x.dtype.itemsize + weight_bytes + B * O * 4
    cost = pl.CostEstimate(flops=flops, transcendentals=B * O,
                           bytes_accessed=bytes_accessed)

    def make_call(weight_mode):
        def wspec(arr, imap):
            if weight_mode is None:
                return pl.BlockSpec(arr.shape, imap)
            return pl.BlockSpec(arr.shape, imap, pipeline_mode=weight_mode)

        return pl.pallas_call(
            kernel,
            out_shape=jax.ShapeDtypeStruct((B, O), jnp.float32),
            grid=(grid_b,),
            in_specs=[
                pl.BlockSpec((TB, I), lambda i: (i, 0)),     # x: batch-tiled stream
                wspec(w_in, lambda i: (0, 0)),               # weights: VMEM-resident
                wspec(b_in, lambda i: (0, 0)),
                wspec(w_h, lambda i: (0, 0, 0)),
                wspec(b_h, lambda i: (0, 0, 0)),
                wspec(w_out, lambda i: (0, 0)),
                wspec(b_out, lambda i: (0, 0)),
            ],
            out_specs=pl.BlockSpec((TB, O), lambda i: (i, 0)),   # unpadded action dim
            compiler_params=pltpu.CompilerParams(
                dimension_semantics=("parallel",),           # shard batch across TCs
                vmem_limit_bytes=vmem_limit,
            ),
            cost_estimate=cost,
        )

    args = (x, w_in, b_in, w_h, b_h, w_out, b_out)
    try:
        # Constant-index weights only need one buffer (halves weight VMEM).
        return make_call(pl.Buffered(1))(*args)
    except Exception:
        # Fallback if this JAX build rejects single-buffered pipeline inputs.
        return make_call(None)(*args)


# ----------------------------------------------------------------------------
# Pure-JAX reference (matches the PyTorch module semantics exactly)
# ----------------------------------------------------------------------------
def policy_net_reference(x, params, action_scale=1.0):
    h = jnp.maximum(x @ params["w_in"].T + params["b_in"], 0.0)
    for l in range(params["w_h"].shape[0]):
        h = jnp.maximum(h @ params["w_h"][l].T + params["b_h"][l], 0.0)
    out = h @ params["w_out"].T + params["b_out"]
    return jnp.tanh(out / action_scale) * action_scale


if __name__ == "__main__":
    input_size = 16
    hidden_size = 32
    output_size = 8
    num_layers = 2
    action_scale = 2.0

    key = jax.random.PRNGKey(0)
    k_param, k_x1, k_x2 = jax.random.split(key, 3)
    params = init_policy_params(k_param, input_size, output_size,
                                num_layers, hidden_size)

    prep_f32 = prepare_policy_params(params, compute_dtype=jnp.float32)
    prep_bf16 = prepare_policy_params(params)   # default bf16 fast path

    # --- Small batch (single block) ---
    x_small = jax.random.normal(k_x1, (2, input_size), jnp.float32)
    ref_small = policy_net_reference(x_small, params, action_scale)

    out_f32 = jax.block_until_ready(policy_net_forward(x_small, prep_f32, action_scale))
    assert out_f32.shape == (2, output_size)
    assert jnp.allclose(out_f32, ref_small, atol=1e-5, rtol=1e-5), "f32 mismatch (small batch)"

    out_bf16 = jax.block_until_ready(policy_net_forward(x_small, prep_bf16, action_scale))
    assert out_bf16.shape == (2, output_size)
    assert jnp.allclose(out_bf16, ref_small, atol=8e-2, rtol=8e-2), "bf16 mismatch (small batch)"

    # --- Larger, non-divisible batch: exercises the ragged last block and the
    # >=2-step ("parallel") batch grid. ---
    x_big = jax.random.normal(k_x2, (40, input_size), jnp.float32)
    ref_big = policy_net_reference(x_big, params, action_scale)

    out_f32_big = jax.block_until_ready(policy_net_forward(x_big, prep_f32, action_scale))
    assert out_f32_big.shape == (40, output_size)
    assert jnp.allclose(out_f32_big, ref_big, atol=1e-5, rtol=1e-5), "f32 mismatch (ragged batch)"

    out_bf16_big = jax.block_until_ready(policy_net_forward(x_big, prep_bf16, action_scale))
    assert out_bf16_big.shape == (40, output_size)
    assert jnp.allclose(out_bf16_big, ref_big, atol=8e-2, rtol=8e-2), "bf16 mismatch (ragged batch)"

    print("KERNEL_OK")
</pallas_src>

<mosaic_0001>
module attributes {stable_mosaic.version = 11 : i64} {
  func.func @policy_net_kernel(%arg0: i32, %arg1: memref<2x16xf32, #tpu.memory_space<vmem>>, %arg2: memref<16x128xf32, #tpu.memory_space<vmem>>, %arg3: memref<1x128xf32, #tpu.memory_space<vmem>>, %arg4: memref<2x128x128xf32, #tpu.memory_space<vmem>>, %arg5: memref<2x1x128xf32, #tpu.memory_space<vmem>>, %arg6: memref<128x8xf32, #tpu.memory_space<vmem>>, %arg7: memref<1x8xf32, #tpu.memory_space<vmem>>, %arg8: memref<2x8xf32, #tpu.memory_space<vmem>>) attributes {dimension_semantics = [#tpu.dimension_semantics<parallel>], iteration_bounds = array<i64: 1>, scalar_prefetch = 0 : i64, scratch_operands = 0 : i64, tpu.core_type = #tpu.core_type<tc>, window_params = [{transform_indices = @transform_0, window_bounds = array<i64: 2, 16>}, {pipeline_mode = #tpu.pipeline_mode<synchronous>, transform_indices = @transform_1, window_bounds = array<i64: 16, 128>}, {pipeline_mode = #tpu.pipeline_mode<synchronous>, transform_indices = @transform_2, window_bounds = array<i64: 1, 128>}, {pipeline_mode = #tpu.pipeline_mode<synchronous>, transform_indices = @transform_3, window_bounds = array<i64: 2, 128, 128>}, {pipeline_mode = #tpu.pipeline_mode<synchronous>, transform_indices = @transform_4, window_bounds = array<i64: 2, 1, 128>}, {pipeline_mode = #tpu.pipeline_mode<synchronous>, transform_indices = @transform_5, window_bounds = array<i64: 128, 8>}, {pipeline_mode = #tpu.pipeline_mode<synchronous>, transform_indices = @transform_6, window_bounds = array<i64: 1, 8>}, {transform_indices = @transform_7, window_bounds = array<i64: 2, 8>}]} {
    %c0 = arith.constant 0 : index
    %c0_0 = arith.constant 0 : index
    %0 = vector.load %arg1[%c0, %c0_0] : memref<2x16xf32, #tpu.memory_space<vmem>>, vector<2x16xf32>
    %c0_1 = arith.constant 0 : index
    %c0_2 = arith.constant 0 : index
    %1 = vector.load %arg2[%c0_1, %c0_2] : memref<16x128xf32, #tpu.memory_space<vmem>>, vector<16x128xf32>
    %cst = arith.constant dense<0.000000e+00> : vector<2x128xf32>
    %2 = tpu.matmul %0, %1, %cst {dimension_numbers = #tpu.dot_dimension_numbers<[1], [0], [0], [1], [0, 0, 1, 1], [], []>} : vector<2x16xf32>, vector<16x128xf32>, vector<2x128xf32> -> vector<2x128xf32>
    %c0_3 = arith.constant 0 : index
    %c0_4 = arith.constant 0 : index
    %3 = vector.load %arg3[%c0_3, %c0_4] : memref<1x128xf32, #tpu.memory_space<vmem>>, vector<1x128xf32>
    %4 = vector.broadcast %3 : vector<1x128xf32> to vector<2x128xf32>
    %5 = arith.addf %2, %4 : vector<2x128xf32>
    %cst_5 = arith.constant 0.000000e+00 : f32
    %6 = vector.broadcast %cst_5 : f32 to vector<2x128xf32>
    %7 = arith.maximumf %5, %6 : vector<2x128xf32>
    %c0_6 = arith.constant 0 : index
    %c0_7 = arith.constant 0 : index
    %c0_8 = arith.constant 0 : index
    %8 = vector.load %arg4[%c0_6, %c0_7, %c0_8] : memref<2x128x128xf32, #tpu.memory_space<vmem>>, vector<1x128x128xf32>
    %9 = vector.shape_cast %8 : vector<1x128x128xf32> to vector<128x128xf32>
    %cst_9 = arith.constant dense<0.000000e+00> : vector<2x128xf32>
    %10 = tpu.matmul %7, %9, %cst_9 {dimension_numbers = #tpu.dot_dimension_numbers<[1], [0], [0], [1], [0, 0, 1, 1], [], []>} : vector<2x128xf32>, vector<128x128xf32>, vector<2x128xf32> -> vector<2x128xf32>
    %c0_10 = arith.constant 0 : index
    %c0_11 = arith.constant 0 : index
    %c0_12 = arith.constant 0 : index
    %11 = vector.load %arg5[%c0_10, %c0_11, %c0_12] : memref<2x1x128xf32, #tpu.memory_space<vmem>>, vector<1x1x128xf32>
    %12 = vector.shape_cast %11 : vector<1x1x128xf32> to vector<1x128xf32>
    %13 = vector.broadcast %12 : vector<1x128xf32> to vector<2x128xf32>
    %14 = arith.addf %10, %13 : vector<2x128xf32>
    %cst_13 = arith.constant 0.000000e+00 : f32
    %15 = vector.broadcast %cst_13 : f32 to vector<2x128xf32>
    %16 = arith.maximumf %14, %15 : vector<2x128xf32>
    %c1 = arith.constant 1 : index
    %c0_14 = arith.constant 0 : index
    %c0_15 = arith.constant 0 : index
    %17 = vector.load %arg4[%c1, %c0_14, %c0_15] : memref<2x128x128xf32, #tpu.memory_space<vmem>>, vector<1x128x128xf32>
    %18 = vector.shape_cast %17 : vector<1x128x128xf32> to vector<128x128xf32>
    %cst_16 = arith.constant dense<0.000000e+00> : vector<2x128xf32>
    %19 = tpu.matmul %16, %18, %cst_16 {dimension_numbers = #tpu.dot_dimension_numbers<[1], [0], [0], [1], [0, 0, 1, 1], [], []>} : vector<2x128xf32>, vector<128x128xf32>, vector<2x128xf32> -> vector<2x128xf32>
    %c1_17 = arith.constant 1 : index
    %c0_18 = arith.constant 0 : index
    %c0_19 = arith.constant 0 : index
    %20 = vector.load %arg5[%c1_17, %c0_18, %c0_19] : memref<2x1x128xf32, #tpu.memory_space<vmem>>, vector<1x1x128xf32>
    %21 = vector.shape_cast %20 : vector<1x1x128xf32> to vector<1x128xf32>
    %22 = vector.broadcast %21 : vector<1x128xf32> to vector<2x128xf32>
    %23 = arith.addf %19, %22 : vector<2x128xf32>
    %cst_20 = arith.constant 0.000000e+00 : f32
    %24 = vector.broadcast %cst_20 : f32 to vector<2x128xf32>
    %25 = arith.maximumf %23, %24 : vector<2x128xf32>
    %c0_21 = arith.constant 0 : index
    %c0_22 = arith.constant 0 : index
    %26 = vector.load %arg6[%c0_21, %c0_22] : memref<128x8xf32, #tpu.memory_space<vmem>>, vector<128x8xf32>
    %cst_23 = arith.constant dense<0.000000e+00> : vector<2x8xf32>
    %27 = tpu.matmul %25, %26, %cst_23 {dimension_numbers = #tpu.dot_dimension_numbers<[1], [0], [0], [1], [0, 0, 1, 1], [], []>} : vector<2x128xf32>, vector<128x8xf32>, vector<2x8xf32> -> vector<2x8xf32>
    %c0_24 = arith.constant 0 : index
    %c0_25 = arith.constant 0 : index
    %28 = vector.load %arg7[%c0_24, %c0_25] : memref<1x8xf32, #tpu.memory_space<vmem>>, vector<1x8xf32>
    %29 = vector.broadcast %28 : vector<1x8xf32> to vector<2x8xf32>
    %30 = arith.addf %27, %29 : vector<2x8xf32>
    %cst_26 = arith.constant 5.000000e-01 : f32
    %31 = vector.broadcast %cst_26 : f32 to vector<2x8xf32>
    %32 = arith.mulf %30, %31 : vector<2x8xf32>
    %33 = math.tanh %32 : vector<2x8xf32>
    %cst_27 = arith.constant 2.000000e+00 : f32
    %34 = vector.broadcast %cst_27 : f32 to vector<2x8xf32>
    %35 = arith.mulf %33, %34 : vector<2x8xf32>
    %c0_28 = arith.constant 0 : index
    %c0_29 = arith.constant 0 : index
    %36 = vector.load %arg8[%c0_28, %c0_29] : memref<2x8xf32, #tpu.memory_space<vmem>>, vector<2x8xf32>
    tpu.vector_store %arg8[%c0_28, %c0_29], %35 {strides = array<i32>} : memref<2x8xf32, #tpu.memory_space<vmem>>, vector<2x8xf32>,
    return
  }
  func.func @transform_0(%arg0: i32) -> (i32, i32) {
    %c0_i32 = arith.constant 0 : i32
    %c0_i32_0 = arith.constant 0 : i32
    return %arg0, %c0_i32 : i32, i32
  }
  func.func @transform_1(%arg0: i32) -> (i32, i32) {
    %c0_i32 = arith.constant 0 : i32
    %c0_i32_0 = arith.constant 0 : i32
    %c0_i32_1 = arith.constant 0 : i32
    return %c0_i32, %c0_i32_0 : i32, i32
  }
  func.func @transform_2(%arg0: i32) -> (i32, i32) {
    %c0_i32 = arith.constant 0 : i32
    %c0_i32_0 = arith.constant 0 : i32
    %c0_i32_1 = arith.constant 0 : i32
    return %c0_i32, %c0_i32_0 : i32, i32
  }
  func.func @transform_3(%arg0: i32) -> (i32, i32, i32) {
    %c0_i32 = arith.constant 0 : i32
    %c0_i32_0 = arith.constant 0 : i32
    %c0_i32_1 = arith.constant 0 : i32
    %c0_i32_2 = arith.constant 0 : i32
    return %c0_i32, %c0_i32_0, %c0_i32_1 : i32, i32, i32
  }
  func.func @transform_4(%arg0: i32) -> (i32, i32, i32) {
    %c0_i32 = arith.constant 0 : i32
    %c0_i32_0 = arith.constant 0 : i32
    %c0_i32_1 = arith.constant 0 : i32
    %c0_i32_2 = arith.constant 0 : i32
    return %c0_i32, %c0_i32_0, %c0_i32_1 : i32, i32, i32
  }
  func.func @transform_5(%arg0: i32) -> (i32, i32) {
    %c0_i32 = arith.constant 0 : i32
    %c0_i32_0 = arith.constant 0 : i32
    %c0_i32_1 = arith.constant 0 : i32
    return %c0_i32, %c0_i32_0 : i32, i32
  }
  func.func @transform_6(%arg0: i32) -> (i32, i32) {
    %c0_i32 = arith.constant 0 : i32
    %c0_i32_0 = arith.constant 0 : i32
    %c0_i32_1 = arith.constant 0 : i32
    return %c0_i32, %c0_i32_0 : i32, i32
  }
  func.func @transform_7(%arg0: i32) -> (i32, i32) {
    %c0_i32 = arith.constant 0 : i32
    %c0_i32_0 = arith.constant 0 : i32
    return %arg0, %c0_i32 : i32, i32
  }
}

module attributes {stable_mosaic.version = 11 : i64} {
  func.func @policy_net_kernel(%arg0: i32, %arg1: memref<2x16xf32, #tpu.memory_space<vmem>>, %arg2: memref<16x128xf32, #tpu.memory_space<vmem>>, %arg3: memref<1x128xf32, #tpu.memory_space<vmem>>, %arg4: memref<2x128x128xf32, #tpu.memory_space<vmem>>, %arg5: memref<2x1x128xf32, #tpu.memory_space<vmem>>, %arg6: memref<128x8xf32, #tpu.memory_space<vmem>>, %arg7: memref<1x8xf32, #tpu.memory_space<vmem>>, %arg8: memref<2x8xf32, #tpu.memory_space<vmem>>) attributes {dimension_semantics = [#tpu.dimension_semantics<parallel>], iteration_bounds = array<i64: 1>, scalar_prefetch = 0 : i64, scratch_operands = 0 : i64, tpu.core_type = #tpu.core_type<tc>, window_params = [{transform_indices = @transform_0, window_bounds = array<i64: 2, 16>}, {pipeline_mode = #tpu.pipeline_mode<synchronous>, transform_indices = @transform_1, window_bounds = array<i64: 16, 128>}, {pipeline_mode = #tpu.pipeline_mode<synchronous>, transform_indices = @transform_2, window_bounds = array<i64: 1, 128>}, {pipeline_mode = #tpu.pipeline_mode<synchronous>, transform_indices = @transform_3, window_bounds = array<i64: 2, 128, 128>}, {pipeline_mode = #tpu.pipeline_mode<synchronous>, transform_indices = @transform_4, window_bounds = array<i64: 2, 1, 128>}, {pipeline_mode = #tpu.pipeline_mode<synchronous>, transform_indices = @transform_5, window_bounds = array<i64: 128, 8>}, {pipeline_mode = #tpu.pipeline_mode<synchronous>, transform_indices = @transform_6, window_bounds = array<i64: 1, 8>}, {transform_indices = @transform_7, window_bounds = array<i64: 2, 8>}]} {
    %c0 = arith.constant 0 : index
    %c0_0 = arith.constant 0 : index
    %0 = vector.load %arg1[%c0, %c0_0] : memref<2x16xf32, #tpu.memory_space<vmem>>, vector<2x16xf32>
    %c0_1 = arith.constant 0 : index
    %c0_2 = arith.constant 0 : index
    %1 = vector.load %arg2[%c0_1, %c0_2] : memref<16x128xf32, #tpu.memory_space<vmem>>, vector<16x128xf32>
    %cst = arith.constant dense<0.000000e+00> : vector<2x128xf32>
    %2 = tpu.matmul %0, %1, %cst {dimension_numbers = #tpu.dot_dimension_numbers<[1], [0], [0], [1], [0, 0, 1, 1], [], []>} : vector<2x16xf32>, vector<16x128xf32>, vector<2x128xf32> -> vector<2x128xf32>
    %c0_3 = arith.constant 0 : index
    %c0_4 = arith.constant 0 : index
    %3 = vector.load %arg3[%c0_3, %c0_4] : memref<1x128xf32, #tpu.memory_space<vmem>>, vector<1x128xf32>
    %4 = vector.broadcast %3 : vector<1x128xf32> to vector<2x128xf32>
    %5 = arith.addf %2, %4 : vector<2x128xf32>
    %cst_5 = arith.constant 0.000000e+00 : f32
    %6 = vector.broadcast %cst_5 : f32 to vector<2x128xf32>
    %7 = arith.maximumf %5, %6 : vector<2x128xf32>
    %c0_6 = arith.constant 0 : index
    %c0_7 = arith.constant 0 : index
    %c0_8 = arith.constant 0 : index
    %8 = vector.load %arg4[%c0_6, %c0_7, %c0_8] : memref<2x128x128xf32, #tpu.memory_space<vmem>>, vector<1x128x128xf32>
    %9 = vector.shape_cast %8 : vector<1x128x128xf32> to vector<128x128xf32>
    %cst_9 = arith.constant dense<0.000000e+00> : vector<2x128xf32>
    %10 = tpu.matmul %7, %9, %cst_9 {dimension_numbers = #tpu.dot_dimension_numbers<[1], [0], [0], [1], [0, 0, 1, 1], [], []>} : vector<2x128xf32>, vector<128x128xf32>, vector<2x128xf32> -> vector<2x128xf32>
    %c0_10 = arith.constant 0 : index
    %c0_11 = arith.constant 0 : index
    %c0_12 = arith.constant 0 : index
    %11 = vector.load %arg5[%c0_10, %c0_11, %c0_12] : memref<2x1x128xf32, #tpu.memory_space<vmem>>, vector<1x1x128xf32>
    %12 = vector.shape_cast %11 : vector<1x1x128xf32> to vector<1x128xf32>
    %13 = vector.broadcast %12 : vector<1x128xf32> to vector<2x128xf32>
    %14 = arith.addf %10, %13 : vector<2x128xf32>
    %cst_13 = arith.constant 0.000000e+00 : f32
    %15 = vector.broadcast %cst_13 : f32 to vector<2x128xf32>
    %16 = arith.maximumf %14, %15 : vector<2x128xf32>
    %c1 = arith.constant 1 : index
    %c0_14 = arith.constant 0 : index
    %c0_15 = arith.constant 0 : index
    %17 = vector.load %arg4[%c1, %c0_14, %c0_15] : memref<2x128x128xf32, #tpu.memory_space<vmem>>, vector<1x128x128xf32>
    %18 = vector.shape_cast %17 : vector<1x128x128xf32> to vector<128x128xf32>
    %cst_16 = arith.constant dense<0.000000e+00> : vector<2x128xf32>
    %19 = tpu.matmul %16, %18, %cst_16 {dimension_numbers = #tpu.dot_dimension_numbers<[1], [0], [0], [1], [0, 0, 1, 1], [], []>} : vector<2x128xf32>, vector<128x128xf32>, vector<2x128xf32> -> vector<2x128xf32>
    %c1_17 = arith.constant 1 : index
    %c0_18 = arith.constant 0 : index
    %c0_19 = arith.constant 0 : index
    %20 = vector.load %arg5[%c1_17, %c0_18, %c0_19] : memref<2x1x128xf32, #tpu.memory_space<vmem>>, vector<1x1x128xf32>
    %21 = vector.shape_cast %20 : vector<1x1x128xf32> to vector<1x128xf32>
    %22 = vector.broadcast %21 : vector<1x128xf32> to vector<2x128xf32>
    %23 = arith.addf %19, %22 : vector<2x128xf32>
    %cst_20 = arith.constant 0.000000e+00 : f32
    %24 = vector.broadcast %cst_20 : f32 to vector<2x128xf32>
    %25 = arith.maximumf %23, %24 : vector<2x128xf32>
    %c0_21 = arith.constant 0 : index
    %c0_22 = arith.constant 0 : index
    %26 = vector.load %arg6[%c0_21, %c0_22] : memref<128x8xf32, #tpu.memory_space<vmem>>, vector<128x8xf32>
    %cst_23 = arith.constant dense<0.000000e+00> : vector<2x8xf32>
    %27 = tpu.matmul %25, %26, %cst_23 {dimension_numbers = #tpu.dot_dimension_numbers<[1], [0], [0], [1], [0, 0, 1, 1], [], []>} : vector<2x128xf32>, vector<128x8xf32>, vector<2x8xf32> -> vector<2x8xf32>
    %c0_24 = arith.constant 0 : index
    %c0_25 = arith.constant 0 : index
    %28 = vector.load %arg7[%c0_24, %c0_25] : memref<1x8xf32, #tpu.memory_space<vmem>>, vector<1x8xf32>
    %29 = vector.broadcast %28 : vector<1x8xf32> to vector<2x8xf32>
    %30 = arith.addf %27, %29 : vector<2x8xf32>
    %cst_26 = arith.constant 5.000000e-01 : f32
    %31 = vector.broadcast %cst_26 : f32 to vector<2x8xf32>
    %32 = arith.mulf %30, %31 : vector<2x8xf32>
    %33 = math.tanh %32 : vector<2x8xf32>
    %cst_27 = arith.constant 2.000000e+00 : f32
    %34 = vector.broadcast %cst_27 : f32 to vector<2x8xf32>
    %35 = arith.mulf %33, %34 : vector<2x8xf32>
    %c0_28 = arith.constant 0 : index
    %c0_29 = arith.constant 0 : index
    %36 = vector.load %arg8[%c0_28, %c0_29] : memref<2x8xf32, #tpu.memory_space<vmem>>, vector<2x8xf32>
    tpu.vector_store %arg8[%c0_28, %c0_29], %35 {strides = array<i32>} : memref<2x8xf32, #tpu.memory_space<vmem>>, vector<2x8xf32>,
    return
  }
  func.func @transform_0(%arg0: i32) -> (i32, i32) {
    %c0_i32 = arith.constant 0 : i32
    %c0_i32_0 = arith.constant 0 : i32
    return %arg0, %c0_i32 : i32, i32
  }
  func.func @transform_1(%arg0: i32) -> (i32, i32) {
    %c0_i32 = arith.constant 0 : i32
    %c0_i32_0 = arith.constant 0 : i32
    %c0_i32_1 = arith.constant 0 : i32
    return %c0_i32, %c0_i32_0 : i32, i32
  }
  func.func @transform_2(%arg0: i32) -> (i32, i32) {
    %c0_i32 = arith.constant 0 : i32
    %c0_i32_0 = arith.constant 0 : i32
    %c0_i32_1 = arith.constant 0 : i32
    return %c0_i32, %c0_i32_0 : i32, i32
  }
  func.func @transform_3(%arg0: i32) -> (i32, i32, i32) {
    %c0_i32 = arith.constant 0 : i32
    %c0_i32_0 = arith.constant 0 : i32
    %c0_i32_1 = arith.constant 0 : i32
    %c0_i32_2 = arith.constant 0 : i32
    return %c0_i32, %c0_i32_0, %c0_i32_1 : i32, i32, i32
  }
  func.func @transform_4(%arg0: i32) -> (i32, i32, i32) {
    %c0_i32 = arith.constant 0 : i32
    %c0_i32_0 = arith.constant 0 : i32
    %c0_i32_1 = arith.constant 0 : i32
    %c0_i32_2 = arith.constant 0 : i32
    return %c0_i32, %c0_i32_0, %c0_i32_1 : i32, i32, i32
  }
  func.func @transform_5(%arg0: i32) -> (i32, i32) {
    %c0_i32 = arith.constant 0 : i32
    %c0_i32_0 = arith.constant 0 : i32
    %c0_i32_1 = arith.constant 0 : i32
    return %c0_i32, %c0_i32_0 : i32, i32
  }
  func.func @transform_6(%arg0: i32) -> (i32, i32) {
    %c0_i32 = arith.constant 0 : i32
    %c0_i32_0 = arith.constant 0 : i32
    %c0_i32_1 = arith.constant 0 : i32
    return %c0_i32, %c0_i32_0 : i32, i32
  }
  func.func @transform_7(%arg0: i32) -> (i32, i32) {
    %c0_i32 = arith.constant 0 : i32
    %c0_i32_0 = arith.constant 0 : i32
    return %arg0, %c0_i32 : i32, i32
  }
}

</mosaic_0001>

<llo_original>
// kernel: tpu_custom_call.1
$region0: #{tpu_custom_call.1}
  #allocation0 [shape = 'u32[]', space=smem, size = 0x4, offset = 0x4, fixed_abs, tag = 'smem constant byte address 0x4 - core index']
  #allocation1 [shape = 'u32[144,128]{1,0:T(1,128)}', space=vmem, size = 0x12000, scoped, tag = 'internal scratch']
  %s0 = inlined_call_operand.vmem [shape: f32[2,16], index: 0, kind: input, shape index: {}]
  %s1 = inlined_call_operand.vmem [shape: f32[16,128], index: 1, kind: input, shape index: {}]
  %s2 = inlined_call_operand.vmem [shape: f32[1,128], index: 2, kind: input, shape index: {}]
  %s3 = inlined_call_operand.hbm [shape: f32[2,128,128], index: 3, kind: input, shape index: {}]
  %s4 = inlined_call_operand.vmem [shape: f32[2,1,128], index: 4, kind: input, shape index: {}]
  %s5 = inlined_call_operand.vmem [shape: f32[128,8], index: 5, kind: input, shape index: {}]
  %s6 = inlined_call_operand.vmem [shape: f32[1,8], index: 6, kind: input, shape index: {}]
  %s7 = inlined_call_operand.hbm [shape: f32[2,8], index: 7, kind: output, shape index: {}]
  %s8 = sld [smem:[#allocation0]]
  $region42: #{tpu_custom_call.1} parent=0
    _
  %s10 = ssub.s32 1, %s8
  %s11 = scalar_select 0, %s10, %s8
  $region1: #{tpu_custom_call.1} parent=0
    #allocation2 [shape = 'u8[131072]{0}', space=vmem, size = 0x20000, scoped, tag = 'input window, operand 3, single buffered']
    #allocation3 [shape = 's32[1]{0}', space=sflag, size = 0x4, scoped, tag = 'scoped memory for tpu_custom_call.1']
    #allocation4 [shape = 's32[1]{0}', space=sflag, size = 0x4, scoped, tag = 'scoped memory for tpu_custom_call.1']
    #allocation5 [shape = 'u8[1024]{0}', space=vmem, size = 0x400, scoped, tag = 'output window, operand 0, single buffered']
    %12 = vsyncpa [#allocation3], 0
    %13 = vsyncpa [#allocation4], 0
    // Predicated region
    $region2: #{tpu_custom_call.1} parent=1 // pred_check
      _
    $region3: #{tpu_custom_call.1} parent=1 // pred_check_branch
      %15 = sbr.rel (0) target = $region5
    $region4: #{tpu_custom_call.1} parent=1 // pred_region
      _
    $region5: #{tpu_custom_call.1} parent=1 // pred_fallthru
      _
    // Predicated region
    $region6: #{tpu_custom_call.1} parent=1 // pred_check
      _
    $region7: #{tpu_custom_call.1} parent=1 // pred_check_branch
      %17 = sbr.rel (0) target = $region9
    $region8: #{tpu_custom_call.1} parent=1 // pred_region
      _
    $region9: #{tpu_custom_call.1} parent=1 // pred_fallthru
      _
    // Predicated region
    $region10: #{tpu_custom_call.1} parent=1 // pred_check
      _
    $region11: #{tpu_custom_call.1} parent=1 // pred_check_branch
      %19 = sbr.rel (0) target = $region13
    $region12: #{tpu_custom_call.1} parent=1 // pred_region
      _
    $region13: #{tpu_custom_call.1} parent=1 // pred_fallthru
      _
    // Predicated region
    $region14: #{tpu_custom_call.1} parent=1 // pred_check
      _
    $region15: #{tpu_custom_call.1} parent=1 // pred_check_branch
      %21 = sbr.rel (0) target = $region17
    $region16: #{tpu_custom_call.1} parent=1 // pred_region
      %s23 = ssub.s32 4096, 4096
      %24 = vsyncadd [#allocation3], %s23
      %s25 = sshll.u32 [#allocation2], 4
      %s26 = int_to_ptr.vmem [resolvable:$true] %s25
      %31 = dma.hbm_to_vmem [thread:$0]  %s3, 4096, %s26, [#allocation3], 128, 128, 8
    $region17: #{tpu_custom_call.1} parent=1 // pred_fallthru
      _
    // Predicated region
    $region18: #{tpu_custom_call.1} parent=1 // pred_check
      _
    $region19: #{tpu_custom_call.1} parent=1 // pred_check_branch
      %33 = sbr.rel (0) target = $region21
    $region20: #{tpu_custom_call.1} parent=1 // pred_region
      _
    $region21: #{tpu_custom_call.1} parent=1 // pred_fallthru
      _
    // Predicated region
    $region22: #{tpu_custom_call.1} parent=1 // pred_check
      _
    $region23: #{tpu_custom_call.1} parent=1 // pred_check_branch
      %35 = sbr.rel (0) target = $region25
    $region24: #{tpu_custom_call.1} parent=1 // pred_region
      _
    $region25: #{tpu_custom_call.1} parent=1 // pred_fallthru
      _
    // Predicated region
    $region26: #{tpu_custom_call.1} parent=1 // pred_check
      _
    $region27: #{tpu_custom_call.1} parent=1 // pred_check_branch
      %37 = sbr.rel (0) target = $region29
    $region28: #{tpu_custom_call.1} parent=1 // pred_region
      _
    $region29: #{tpu_custom_call.1} parent=1 // pred_fallthru
      _
    // Predicated region
    $region30: #{tpu_custom_call.1} parent=1 // pred_check
      _
    $region31: #{tpu_custom_call.1} parent=1 // pred_check_branch
      %39 = sbr.rel (0) target = $region33
    $region32: #{tpu_custom_call.1} parent=1 // pred_region
      %40 = dma.done [#allocation3], 4096
    $region33: #{tpu_custom_call.1} parent=1 // pred_fallthru
      _
    %v41 = vld [vmem:[%s0] sm:$0x3]
    %v42 = vld [vmem:[%s1] sm:$0xff]
    %v43 = vld [vmem:[%s1 + $0x8] sm:$0xff]
    %v44 = vld [vmem:[%s2] sm:$0x1]
    %v46 = vlaneseq
    %v47 = vshrl.u32 %v46, 7
    %v48 = vsub.s32 0, %v47
    %v49 = vrot.slane %v44, %v48
    %vm51 = vcmask 130048
    %v53 = vsel %vm51, %v41, 0
    %55 = vmatprep.subr.mxu0 0.0
    %56 = vmatpush1.msra.mxu0 %v42
    %57 = vmatprep.subr.mxu0 0.0
    %58 = vmatpush1.msra.mxu0 %v43
    %59 = vmatprep.subr.mxu0 0.0
    %60 = vmatpush1.msra.mxu0 0.0
    %61 = vmatprep.subr.mxu0 0.0
    %62 = vmatpush1.msra.mxu0 0.0
    %63 = vmatprep.subr.mxu0 0.0
    %64 = vmatpush1.msra.mxu0 0.0
    %65 = vmatprep.subr.mxu0 0.0
    %66 = vmatpush1.msra.mxu0 0.0
    %67 = vmatprep.subr.mxu0 0.0
    %68 = vmatpush1.msra.mxu0 0.0
    %69 = vmatprep.subr.mxu0 0.0
    %70 = vmatpush1.msra.mxu0 0.0
    %71 = vmatprep.subr.mxu0 0.0
    %72 = vmatpush1.msra.mxu0 0.0
    %73 = vmatprep.subr.mxu0 0.0
    %74 = vmatpush1.msra.mxu0 0.0
    %75 = vmatprep.subr.mxu0 0.0
    %76 = vmatpush1.msra.mxu0 0.0
    %77 = vmatprep.subr.mxu0 0.0
    %78 = vmatpush1.msra.mxu0 0.0
    %79 = vmatprep.subr.mxu0 0.0
    %80 = vmatpush1.msra.mxu0 0.0
    %81 = vmatprep.subr.mxu0 0.0
    %82 = vmatpush1.msra.mxu0 0.0
    %83 = vmatprep.subr.mxu0 0.0
    %84 = vmatpush1.msra.mxu0 0.0
    %85 = vmatprep.subr.mxu0 0.0
    %86 = vmatpush1.msra.mxu0 0.0
    %87 = vmatprep.subr.mxu0 0.0
    %88 = vmatpush1.msra.mxu0 0.0
    %89 = vmatprep.subr.mxu0 0.0
    %90 = vmatpush1.msra.mxu0 0.0
    %91 = vmatprep.subr.mxu0 0.0
    %92 = vmatpush1.msra.mxu0 0.0
    %93 = vmatprep.subr.mxu0 0.0
    %94 = vmatpush1.msra.mxu0 0.0
    %95 = vmatprep.subr.mxu0 0.0
    %96 = vmatpush1.msra.mxu0 0.0
    %97 = vmatprep.subr.mxu0 0.0
    %98 = vmatpush1.msra.mxu0 0.0
    %99 = vmatprep.subr.mxu0 0.0
    %100 = vmatpush1.msra.mxu0 0.0
    %101 = vmatprep.subr.mxu0 0.0
    %102 = vmatpush1.msra.mxu0 0.0
    %103 = vmatprep.subr.mxu0 0.0
    %104 = vmatpush1.msra.mxu0 0.0
    %105 = vmatprep.subr.mxu0 0.0
    %106 = vmatpush1.msra.mxu0 0.0
    %107 = vmatprep.subr.mxu0 0.0
    %108 = vmatpush1.msra.mxu0 0.0
    %109 = vmatprep.subr.mxu0 0.0
    %110 = vmatpush1.msra.mxu0 0.0
    %111 = vmatprep.subr.mxu0 0.0
    %112 = vmatpush1.msra.mxu0 0.0
    %113 = vmatprep.subr.mxu0 0.0
    %114 = vmatpush1.msra.mxu0 0.0
    %115 = vmatprep.subr.mxu0 0.0
    %116 = vmatpush1.msra.mxu0 0.0
    %117 = vmatprep.subr.mxu0 0.0
    %118 = vmatpush1.msra.mxu0 0.0
    %119 = vmatprep.mubr.f32.mxu0 0.0
    %120 = vmatmul.mubr.f32.gmra.mrb[0].mxu0 %v53
    %v121 = vpop.f32.mrb[0].mxu0
    %v122 = vadd.f32 %v49, %v121
    %v123 = vpop.f32.mrb[0].mxu0
    %124 = vdwg.mxu0
    %v125 = vmax.f32 %v122, 0.0
    %v126 = vld [vmem:[#allocation2] sm:$0xff]
    %v127 = vld [vmem:[#allocation2 + $0x8] sm:$0xff]
    %v128 = vld [vmem:[#allocation2 + $0x10] sm:$0xff]
    %v129 = vld [vmem:[#allocation2 + $0x18] sm:$0xff]
    %v130 = vld [vmem:[#allocation2 + $0x20] sm:$0xff]
    %v131 = vld [vmem:[#allocation2 + $0x28] sm:$0xff]
    %v132 = vld [vmem:[#allocation2 + $0x30] sm:$0xff]
    %v133 = vld [vmem:[#allocation2 + $0x38] sm:$0xff]
    %v134 = vld [vmem:[#allocation2 + $0x40] sm:$0xff]
    %v135 = vld [vmem:[#allocation2 + $0x48] sm:$0xff]
    %v136 = vld [vmem:[#allocation2 + $0x50] sm:$0xff]
    %v137 = vld [vmem:[#allocation2 + $0x58] sm:$0xff]
    %v138 = vld [vmem:[#allocation2 + $0x60] sm:$0xff]
    %v139 = vld [vmem:[#allocation2 + $0x68] sm:$0xff]
    %v140 = vld [vmem:[#allocation2 + $0x70] sm:$0xff]
    %v141 = vld [vmem:[#allocation2 + $0x78] sm:$0xff]
    %v142 = vld [vmem:[%s4] sm:$0x1]
    %v144 = vlaneseq
    %v145 = vshrl.u32 %v144, 7
    %v146 = vsub.s32 0, %v145
    %v147 = vrot.slane %v142, %v146
    %149 = vmatprep.subr.mxu0 0.0
    %150 = vmatpush1.msra.mxu0 %v126
    %151 = vmatprep.subr.mxu0 0.0
    %152 = vmatpush1.msra.mxu0 %v127
    %153 = vmatprep.subr.mxu0 0.0
    %154 = vmatpush1.msra.mxu0 %v128
    %155 = vmatprep.subr.mxu0 0.0
    %156 = vmatpush1.msra.mxu0 %v129
    %157 = vmatprep.subr.mxu0 0.0
    %158 = vmatpush1.msra.mxu0 %v130
    %159 = vmatprep.subr.mxu0 0.0
    %160 = vmatpush1.msra.mxu0 %v131
    %161 = vmatprep.subr.mxu0 0.0
    %162 = vmatpush1.msra.mxu0 %v132
    %163 = vmatprep.subr.mxu0 0.0
    %164 = vmatpush1.msra.mxu0 %v133
    %165 = vmatprep.subr.mxu0 0.0
    %166 = vmatpush1.msra.mxu0 %v134
    %167 = vmatprep.subr.mxu0 0.0
    %168 = vmatpush1.msra.mxu0 %v135
    %169 = vmatprep.subr.mxu0 0.0
    %170 = vmatpush1.msra.mxu0 %v136
    %171 = vmatprep.subr.mxu0 0.0
    %172 = vmatpush1.msra.mxu0 %v137
    %173 = vmatprep.subr.mxu0 0.0
    %174 = vmatpush1.msra.mxu0 %v138
    %175 = vmatprep.subr.mxu0 0.0
    %176 = vmatpush1.msra.mxu0 %v139
    %177 = vmatprep.subr.mxu0 0.0
    %178 = vmatpush1.msra.mxu0 %v140
    %179 = vmatprep.subr.mxu0 0.0
    %180 = vmatpush1.msra.mxu0 %v141
    %181 = vmatprep.subr.mxu0 0.0
    %182 = vmatpush1.msra.mxu0 0.0
    %183 = vmatprep.subr.mxu0 0.0
    %184 = vmatpush1.msra.mxu0 0.0
    %185 = vmatprep.subr.mxu0 0.0
    %186 = vmatpush1.msra.mxu0 0.0
    %187 = vmatprep.subr.mxu0 0.0
    %188 = vmatpush1.msra.mxu0 0.0
    %189 = vmatprep.subr.mxu0 0.0
    %190 = vmatpush1.msra.mxu0 0.0
    %191 = vmatprep.subr.mxu0 0.0
    %192 = vmatpush1.msra.mxu0 0.0
    %193 = vmatprep.subr.mxu0 0.0
    %194 = vmatpush1.msra.mxu0 0.0
    %195 = vmatprep.subr.mxu0 0.0
    %196 = vmatpush1.msra.mxu0 0.0
    %197 = vmatprep.subr.mxu0 0.0
    %198 = vmatpush1.msra.mxu0 0.0
    %199 = vmatprep.subr.mxu0 0.0
    %200 = vmatpush1.msra.mxu0 0.0
    %201 = vmatprep.subr.mxu0 0.0
    %202 = vmatpush1.msra.mxu0 0.0
    %203 = vmatprep.subr.mxu0 0.0
    %204 = vmatpush1.msra.mxu0 0.0
    %205 = vmatprep.subr.mxu0 0.0
    %206 = vmatpush1.msra.mxu0 0.0
    %207 = vmatprep.subr.mxu0 0.0
    %208 = vmatpush1.msra.mxu0 0.0
    %209 = vmatprep.subr.mxu0 0.0
    %210 = vmatpush1.msra.mxu0 0.0
    %211 = vmatprep.subr.mxu0 0.0
    %212 = vmatpush1.msra.mxu0 0.0
    %213 = vmatprep.mubr.f32.mxu0 0.0
    %214 = vmatmul.mubr.f32.gmra.mrb[0].mxu0 %v125
    %v215 = vpop.f32.mrb[0].mxu0
    %v216 = vadd.f32 %v147, %v215
    %v217 = vpop.f32.mrb[0].mxu0
    %218 = vdwg.mxu0
    %v219 = vmax.f32 %v216, 0.0
    %s220 = scalar_lea.vmem [#allocation2], 128
    %v221 = vld [vmem:[%s220] sm:$0xff]
    %v222 = vld [vmem:[%s220 + $0x8] sm:$0xff]
    %v223 = vld [vmem:[%s220 + $0x10] sm:$0xff]
    %v224 = vld [vmem:[%s220 + $0x18] sm:$0xff]
    %v225 = vld [vmem:[%s220 + $0x20] sm:$0xff]
    %v226 = vld [vmem:[%s220 + $0x28] sm:$0xff]
    %v227 = vld [vmem:[%s220 + $0x30] sm:$0xff]
    %v228 = vld [vmem:[%s220 + $0x38] sm:$0xff]
    %v229 = vld [vmem:[%s220 + $0x40] sm:$0xff]
    %v230 = vld [vmem:[%s220 + $0x48] sm:$0xff]
    %v231 = vld [vmem:[%s220 + $0x50] sm:$0xff]
    %v232 = vld [vmem:[%s220 + $0x58] sm:$0xff]
    %v233 = vld [vmem:[%s220 + $0x60] sm:$0xff]
    %v234 = vld [vmem:[%s220 + $0x68] sm:$0xff]
    %v235 = vld [vmem:[%s220 + $0x70] sm:$0xff]
    %v236 = vld [vmem:[%s220 + $0x78] sm:$0xff]
    %s237 = scalar_lea.vmem %s4, 1
    %v238 = vld [vmem:[%s237] sm:$0x1]
    %v240 = vlaneseq
    %v241 = vshrl.u32 %v240, 7
    %v242 = vsub.s32 0, %v241
    %v243 = vrot.slane %v238, %v242
    %245 = vmatprep.subr.mxu0 0.0
    %246 = vmatpush1.msra.mxu0 %v221
    %247 = vmatprep.subr.mxu0 0.0
    %248 = vmatpush1.msra.mxu0 %v222
    %249 = vmatprep.subr.mxu0 0.0
    %250 = vmatpush1.msra.mxu0 %v223
    %251 = vmatprep.subr.mxu0 0.0
    %252 = vmatpush1.msra.mxu0 %v224
    %253 = vmatprep.subr.mxu0 0.0
    %254 = vmatpush1.msra.mxu0 %v225
    %255 = vmatprep.subr.mxu0 0.0
    %256 = vmatpush1.msra.mxu0 %v226
    %257 = vmatprep.subr.mxu0 0.0
    %258 = vmatpush1.msra.mxu0 %v227
    %259 = vmatprep.subr.mxu0 0.0
    %260 = vmatpush1.msra.mxu0 %v228
    %261 = vmatprep.subr.mxu0 0.0
    %262 = vmatpush1.msra.mxu0 %v229
    %263 = vmatprep.subr.mxu0 0.0
    %264 = vmatpush1.msra.mxu0 %v230
    %265 = vmatprep.subr.mxu0 0.0
    %266 = vmatpush1.msra.mxu0 %v231
    %267 = vmatprep.subr.mxu0 0.0
    %268 = vmatpush1.msra.mxu0 %v232
    %269 = vmatprep.subr.mxu0 0.0
    %270 = vmatpush1.msra.mxu0 %v233
    %271 = vmatprep.subr.mxu0 0.0
    %272 = vmatpush1.msra.mxu0 %v234
    %273 = vmatprep.subr.mxu0 0.0
    %274 = vmatpush1.msra.mxu0 %v235
    %275 = vmatprep.subr.mxu0 0.0
    %276 = vmatpush1.msra.mxu0 %v236
    %277 = vmatprep.subr.mxu0 0.0
    %278 = vmatpush1.msra.mxu0 0.0
    %279 = vmatprep.subr.mxu0 0.0
    %280 = vmatpush1.msra.mxu0 0.0
    %281 = vmatprep.subr.mxu0 0.0
    %282 = vmatpush1.msra.mxu0 0.0
    %283 = vmatprep.subr.mxu0 0.0
    %284 = vmatpush1.msra.mxu0 0.0
    %285 = vmatprep.subr.mxu0 0.0
    %286 = vmatpush1.msra.mxu0 0.0
    %287 = vmatprep.subr.mxu0 0.0
    %288 = vmatpush1.msra.mxu0 0.0
    %289 = vmatprep.subr.mxu0 0.0
    %290 = vmatpush1.msra.mxu0 0.0
    %291 = vmatprep.subr.mxu0 0.0
    %292 = vmatpush1.msra.mxu0 0.0
    %293 = vmatprep.subr.mxu0 0.0
    %294 = vmatpush1.msra.mxu0 0.0
    %295 = vmatprep.subr.mxu0 0.0
    %296 = vmatpush1.msra.mxu0 0.0
    %297 = vmatprep.subr.mxu0 0.0
    %298 = vmatpush1.msra.mxu0 0.0
    %299 = vmatprep.subr.mxu0 0.0
    %300 = vmatpush1.msra.mxu0 0.0
    %301 = vmatprep.subr.mxu0 0.0
    %302 = vmatpush1.msra.mxu0 0.0
    %303 = vmatprep.subr.mxu0 0.0
    %304 = vmatpush1.msra.mxu0 0.0
    %305 = vmatprep.subr.mxu0 0.0
    %306 = vmatpush1.msra.mxu0 0.0
    %307 = vmatprep.subr.mxu0 0.0
    %308 = vmatpush1.msra.mxu0 0.0
    %309 = vmatprep.mubr.f32.mxu0 0.0
    %310 = vmatmul.mubr.f32.gmra.mrb[0].mxu0 %v219
    %v311 = vpop.f32.mrb[0].mxu0
    %v312 = vadd.f32 %v243, %v311
    %v313 = vpop.f32.mrb[0].mxu0
    %314 = vdwg.mxu0
    %v315 = vmax.f32 %v312, 0.0
    %v316 = vld [vmem:[%s5] sm:$0xff]
    %v317 = vld [vmem:[%s5 + $0x8] sm:$0xff]
    %v318 = vld [vmem:[%s5 + $0x10] sm:$0xff]
    %v319 = vld [vmem:[%s5 + $0x18] sm:$0xff]
    %v320 = vld [vmem:[%s5 + $0x20] sm:$0xff]
    %v321 = vld [vmem:[%s5 + $0x28] sm:$0xff]
    %v322 = vld [vmem:[%s5 + $0x30] sm:$0xff]
    %v323 = vld [vmem:[%s5 + $0x38] sm:$0xff]
    %v324 = vld [vmem:[%s5 + $0x40] sm:$0xff]
    %v325 = vld [vmem:[%s5 + $0x48] sm:$0xff]
    %v326 = vld [vmem:[%s5 + $0x50] sm:$0xff]
    %v327 = vld [vmem:[%s5 + $0x58] sm:$0xff]
    %v328 = vld [vmem:[%s5 + $0x60] sm:$0xff]
    %v329 = vld [vmem:[%s5 + $0x68] sm:$0xff]
    %v330 = vld [vmem:[%s5 + $0x70] sm:$0xff]
    %v331 = vld [vmem:[%s5 + $0x78] sm:$0xff]
    %v332 = vld [vmem:[%s6] sm:$0x1]
    %v334 = vlaneseq
    %v335 = vshrl.u32 %v334, 7
    %v336 = vsub.s32 0, %v335
    %v337 = vrot.slane %v332, %v336
    %339 = vmatprep.subr.mxu0 0.0
    %340 = vmatpush1.msra.mxu0 %v316
    %341 = vmatprep.subr.mxu0 0.0
    %342 = vmatpush1.msra.mxu0 %v317
    %343 = vmatprep.subr.mxu0 0.0
    %344 = vmatpush1.msra.mxu0 %v318
    %345 = vmatprep.subr.mxu0 0.0
    %346 = vmatpush1.msra.mxu0 %v319
    %347 = vmatprep.subr.mxu0 0.0
    %348 = vmatpush1.msra.mxu0 %v320
    %349 = vmatprep.subr.mxu0 0.0
    %350 = vmatpush1.msra.mxu0 %v321
    %351 = vmatprep.subr.mxu0 0.0
    %352 = vmatpush1.msra.mxu0 %v322
    %353 = vmatprep.subr.mxu0 0.0
    %354 = vmatpush1.msra.mxu0 %v323
    %355 = vmatprep.subr.mxu0 0.0
    %356 = vmatpush1.msra.mxu0 %v324
    %357 = vmatprep.subr.mxu0 0.0
    %358 = vmatpush1.msra.mxu0 %v325
    %359 = vmatprep.subr.mxu0 0.0
    %360 = vmatpush1.msra.mxu0 %v326
    %361 = vmatprep.subr.mxu0 0.0
    %362 = vmatpush1.msra.mxu0 %v327
    %363 = vmatprep.subr.mxu0 0.0
    %364 = vmatpush1.msra.mxu0 %v328
    %365 = vmatprep.subr.mxu0 0.0
    %366 = vmatpush1.msra.mxu0 %v329
    %367 = vmatprep.subr.mxu0 0.0
    %368 = vmatpush1.msra.mxu0 %v330
    %369 = vmatprep.subr.mxu0 0.0
    %370 = vmatpush1.msra.mxu0 %v331
    %371 = vmatprep.subr.mxu0 0.0
    %372 = vmatpush1.msra.mxu0 0.0
    %373 = vmatprep.subr.mxu0 0.0
    %374 = vmatpush1.msra.mxu0 0.0
    %375 = vmatprep.subr.mxu0 0.0
    %376 = vmatpush1.msra.mxu0 0.0
    %377 = vmatprep.subr.mxu0 0.0
    %378 = vmatpush1.msra.mxu0 0.0
    %379 = vmatprep.subr.mxu0 0.0
    %380 = vmatpush1.msra.mxu0 0.0
    %381 = vmatprep.subr.mxu0 0.0
    %382 = vmatpush1.msra.mxu0 0.0
    %383 = vmatprep.subr.mxu0 0.0
    %384 = vmatpush1.msra.mxu0 0.0
    %385 = vmatprep.subr.mxu0 0.0
    %386 = vmatpush1.msra.mxu0 0.0
    %387 = vmatprep.subr.mxu0 0.0
    %388 = vmatpush1.msra.mxu0 0.0
    %389 = vmatprep.subr.mxu0 0.0
    %390 = vmatpush1.msra.mxu0 0.0
    %391 = vmatprep.subr.mxu0 0.0
    %392 = vmatpush1.msra.mxu0 0.0
    %393 = vmatprep.subr.mxu0 0.0
    %394 = vmatpush1.msra.mxu0 0.0
    %395 = vmatprep.subr.mxu0 0.0
    %396 = vmatpush1.msra.mxu0 0.0
    %397 = vmatprep.subr.mxu0 0.0
    %398 = vmatpush1.msra.mxu0 0.0
    %399 = vmatprep.subr.mxu0 0.0
    %400 = vmatpush1.msra.mxu0 0.0
    %401 = vmatprep.subr.mxu0 0.0
    %402 = vmatpush1.msra.mxu0 0.0
    %403 = vmatprep.mubr.f32.mxu0 0.0
    %404 = vmatmul.mubr.f32.gmra.mrb[0].mxu0 %v315
    %v405 = vpop.f32.mrb[0].mxu0
    %v406 = vadd.f32 %v337, %v405
    %v407 = vpop.f32.mrb[0].mxu0
    %408 = vdwg.mxu0
    %v409 = vmul.f32 %v406, 0.5
    %v410 = vtanh.pop %v409
    %v411 = vmul.f32 %v410, 2.0
    %vm412 = vcmask 58368
    %413 = vst.msk [vmem:[#allocation5] sm:$0x3] %vm412, %v411
    // Predicated region
    $region34: #{tpu_custom_call.1} parent=1 // pred_check
      _
    $region35: #{tpu_custom_call.1} parent=1 // pred_check_branch
      %415 = sbr.rel (0) target = $region37
    $region36: #{tpu_custom_call.1} parent=1 // pred_region
      %s417 = ssub.s32 32, 32
      %418 = vsyncadd [#allocation4], %s417
      %s420 = sshll.u32 [#allocation5], 4
      %s421 = int_to_ptr.vmem [resolvable:$true] %s420
      %423 = dma.vmem_to_hbm [thread:$0]  %s421, 32, %s7, [#allocation4]
    $region37: #{tpu_custom_call.1} parent=1 // pred_fallthru
      _
    // Predicated region
    $region38: #{tpu_custom_call.1} parent=1 // pred_check
      _
    $region39: #{tpu_custom_call.1} parent=1 // pred_check_branch
      %425 = sbr.rel (0) target = $region41
    $region40: #{tpu_custom_call.1} parent=1 // pred_region
      %426 = dma.done [#allocation4], 32
    $region41: #{tpu_custom_call.1} parent=1 // pred_fallthru
      _
    %427 = vsyncpa [#allocation3], 1
    %428 = vsyncpa [#allocation4], 1

// kernel: tpu_custom_call.1
$region0: #{tpu_custom_call.1}
  #allocation0 [shape = 'u32[]', space=smem, size = 0x4, offset = 0x4, fixed_abs, tag = 'smem constant byte address 0x4 - core index']
  #allocation1 [shape = 'u32[144,128]{1,0:T(1,128)}', space=vmem, size = 0x12000, scoped, tag = 'internal scratch']
  %s0 = inlined_call_operand.vmem [shape: f32[2,16], index: 0, kind: input, shape index: {}]
  %s1 = inlined_call_operand.vmem [shape: f32[16,128], index: 1, kind: input, shape index: {}]
  %s2 = inlined_call_operand.vmem [shape: f32[1,128], index: 2, kind: input, shape index: {}]
  %s3 = inlined_call_operand.hbm [shape: f32[2,128,128], index: 3, kind: input, shape index: {}]
  %s4 = inlined_call_operand.vmem [shape: f32[2,1,128], index: 4, kind: input, shape index: {}]
  %s5 = inlined_call_operand.vmem [shape: f32[128,8], index: 5, kind: input, shape index: {}]
  %s6 = inlined_call_operand.vmem [shape: f32[1,8], index: 6, kind: input, shape index: {}]
  %s7 = inlined_call_operand.hbm [shape: f32[2,8], index: 7, kind: output, shape index: {}]
  %s8 = sld [smem:[#allocation0]]
  $region42: #{tpu_custom_call.1} parent=0
    _
  %s10 = ssub.s32 1, %s8
  %s11 = scalar_select 0, %s10, %s8
  $region1: #{tpu_custom_call.1} parent=0
    #allocation2 [shape = 'u8[131072]{0}', space=vmem, size = 0x20000, scoped, tag = 'input window, operand 3, single buffered']
    #allocation3 [shape = 's32[1]{0}', space=sflag, size = 0x4, scoped, tag = 'scoped memory for tpu_custom_call.1']
    #allocation4 [shape = 's32[1]{0}', space=sflag, size = 0x4, scoped, tag = 'scoped memory for tpu_custom_call.1']
    #allocation5 [shape = 'u8[1024]{0}', space=vmem, size = 0x400, scoped, tag = 'output window, operand 0, single buffered']
    %12 = vsyncpa [#allocation3], 0
    %13 = vsyncpa [#allocation4], 0
    // Predicated region
    $region2: #{tpu_custom_call.1} parent=1 // pred_check
      _
    $region3: #{tpu_custom_call.1} parent=1 // pred_check_branch
      %15 = sbr.rel (0) target = $region5
    $region4: #{tpu_custom_call.1} parent=1 // pred_region
      _
    $region5: #{tpu_custom_call.1} parent=1 // pred_fallthru
      _
    // Predicated region
    $region6: #{tpu_custom_call.1} parent=1 // pred_check
      _
    $region7: #{tpu_custom_call.1} parent=1 // pred_check_branch
      %17 = sbr.rel (0) target = $region9
    $region8: #{tpu_custom_call.1} parent=1 // pred_region
      _
    $region9: #{tpu_custom_call.1} parent=1 // pred_fallthru
      _
    // Predicated region
    $region10: #{tpu_custom_call.1} parent=1 // pred_check
      _
    $region11: #{tpu_custom_call.1} parent=1 // pred_check_branch
      %19 = sbr.rel (0) target = $region13
    $region12: #{tpu_custom_call.1} parent=1 // pred_region
      _
    $region13: #{tpu_custom_call.1} parent=1 // pred_fallthru
      _
    // Predicated region
    $region14: #{tpu_custom_call.1} parent=1 // pred_check
      _
    $region15: #{tpu_custom_call.1} parent=1 // pred_check_branch
      %21 = sbr.rel (0) target = $region17
    $region16: #{tpu_custom_call.1} parent=1 // pred_region
      %s23 = ssub.s32 4096, 4096
      %24 = vsyncadd [#allocation3], %s23
      %s25 = sshll.u32 [#allocation2], 4
      %s26 = int_to_ptr.vmem [resolvable:$true] %s25
      %31 = dma.hbm_to_vmem [thread:$0]  %s3, 4096, %s26, [#allocation3], 128, 128, 8
    $region17: #{tpu_custom_call.1} parent=1 // pred_fallthru
      _
    // Predicated region
    $region18: #{tpu_custom_call.1} parent=1 // pred_check
      _
    $region19: #{tpu_custom_call.1} parent=1 // pred_check_branch
      %33 = sbr.rel (0) target = $region21
    $region20: #{tpu_custom_call.1} parent=1 // pred_region
      _
    $region21: #{tpu_custom_call.1} parent=1 // pred_fallthru
      _
    // Predicated region
    $region22: #{tpu_custom_call.1} parent=1 // pred_check
      _
    $region23: #{tpu_custom_call.1} parent=1 // pred_check_branch
      %35 = sbr.rel (0) target = $region25
    $region24: #{tpu_custom_call.1} parent=1 // pred_region
      _
    $region25: #{tpu_custom_call.1} parent=1 // pred_fallthru
      _
    // Predicated region
    $region26: #{tpu_custom_call.1} parent=1 // pred_check
      _
    $region27: #{tpu_custom_call.1} parent=1 // pred_check_branch
      %37 = sbr.rel (0) target = $region29
    $region28: #{tpu_custom_call.1} parent=1 // pred_region
      _
    $region29: #{tpu_custom_call.1} parent=1 // pred_fallthru
      _
    // Predicated region
    $region30: #{tpu_custom_call.1} parent=1 // pred_check
      _
    $region31: #{tpu_custom_call.1} parent=1 // pred_check_branch
      %39 = sbr.rel (0) target = $region33
    $region32: #{tpu_custom_call.1} parent=1 // pred_region
      %40 = dma.done [#allocation3], 4096
    $region33: #{tpu_custom_call.1} parent=1 // pred_fallthru
      _
    %v41 = vld [vmem:[%s0] sm:$0x3]
    %v42 = vld [vmem:[%s1] sm:$0xff]
    %v43 = vld [vmem:[%s1 + $0x8] sm:$0xff]
    %v44 = vld [vmem:[%s2] sm:$0x1]
    %v46 = vlaneseq
    %v47 = vshrl.u32 %v46, 7
    %v48 = vsub.s32 0, %v47
    %v49 = vrot.slane %v44, %v48
    %vm51 = vcmask 130048
    %v53 = vsel %vm51, %v41, 0
    %55 = vmatprep.subr.mxu0 0.0
    %56 = vmatpush1.msra.mxu0 %v42
    %57 = vmatprep.subr.mxu0 0.0
    %58 = vmatpush1.msra.mxu0 %v43
    %59 = vmatprep.subr.mxu0 0.0
    %60 = vmatpush1.msra.mxu0 0.0
    %61 = vmatprep.subr.mxu0 0.0
    %62 = vmatpush1.msra.mxu0 0.0
    %63 = vmatprep.subr.mxu0 0.0
    %64 = vmatpush1.msra.mxu0 0.0
    %65 = vmatprep.subr.mxu0 0.0
    %66 = vmatpush1.msra.mxu0 0.0
    %67 = vmatprep.subr.mxu0 0.0
    %68 = vmatpush1.msra.mxu0 0.0
    %69 = vmatprep.subr.mxu0 0.0
    %70 = vmatpush1.msra.mxu0 0.0
    %71 = vmatprep.subr.mxu0 0.0
    %72 = vmatpush1.msra.mxu0 0.0
    %73 = vmatprep.subr.mxu0 0.0
    %74 = vmatpush1.msra.mxu0 0.0
    %75 = vmatprep.subr.mxu0 0.0
    %76 = vmatpush1.msra.mxu0 0.0
    %77 = vmatprep.subr.mxu0 0.0
    %78 = vmatpush1.msra.mxu0 0.0
    %79 = vmatprep.subr.mxu0 0.0
    %80 = vmatpush1.msra.mxu0 0.0
    %81 = vmatprep.subr.mxu0 0.0
    %82 = vmatpush1.msra.mxu0 0.0
    %83 = vmatprep.subr.mxu0 0.0
    %84 = vmatpush1.msra.mxu0 0.0
    %85 = vmatprep.subr.mxu0 0.0
    %86 = vmatpush1.msra.mxu0 0.0
    %87 = vmatprep.subr.mxu0 0.0
    %88 = vmatpush1.msra.mxu0 0.0
    %89 = vmatprep.subr.mxu0 0.0
    %90 = vmatpush1.msra.mxu0 0.0
    %91 = vmatprep.subr.mxu0 0.0
    %92 = vmatpush1.msra.mxu0 0.0
    %93 = vmatprep.subr.mxu0 0.0
    %94 = vmatpush1.msra.mxu0 0.0
    %95 = vmatprep.subr.mxu0 0.0
    %96 = vmatpush1.msra.mxu0 0.0
    %97 = vmatprep.subr.mxu0 0.0
    %98 = vmatpush1.msra.mxu0 0.0
    %99 = vmatprep.subr.mxu0 0.0
    %100 = vmatpush1.msra.mxu0 0.0
    %101 = vmatprep.subr.mxu0 0.0
    %102 = vmatpush1.msra.mxu0 0.0
    %103 = vmatprep.subr.mxu0 0.0
    %104 = vmatpush1.msra.mxu0 0.0
    %105 = vmatprep.subr.mxu0 0.0
    %106 = vmatpush1.msra.mxu0 0.0
    %107 = vmatprep.subr.mxu0 0.0
    %108 = vmatpush1.msra.mxu0 0.0
    %109 = vmatprep.subr.mxu0 0.0
    %110 = vmatpush1.msra.mxu0 0.0
    %111 = vmatprep.subr.mxu0 0.0
    %112 = vmatpush1.msra.mxu0 0.0
    %113 = vmatprep.subr.mxu0 0.0
    %114 = vmatpush1.msra.mxu0 0.0
    %115 = vmatprep.subr.mxu0 0.0
    %116 = vmatpush1.msra.mxu0 0.0
    %117 = vmatprep.subr.mxu0 0.0
    %118 = vmatpush1.msra.mxu0 0.0
    %119 = vmatprep.mubr.f32.mxu0 0.0
    %120 = vmatmul.mubr.f32.gmra.mrb[0].mxu0 %v53
    %v121 = vpop.f32.mrb[0].mxu0
    %v122 = vadd.f32 %v49, %v121
    %v123 = vpop.f32.mrb[0].mxu0
    %124 = vdwg.mxu0
    %v125 = vmax.f32 %v122, 0.0
    %v126 = vld [vmem:[#allocation2] sm:$0xff]
    %v127 = vld [vmem:[#allocation2 + $0x8] sm:$0xff]
    %v128 = vld [vmem:[#allocation2 + $0x10] sm:$0xff]
    %v129 = vld [vmem:[#allocation2 + $0x18] sm:$0xff]
    %v130 = vld [vmem:[#allocation2 + $0x20] sm:$0xff]
    %v131 = vld [vmem:[#allocation2 + $0x28] sm:$0xff]
    %v132 = vld [vmem:[#allocation2 + $0x30] sm:$0xff]
    %v133 = vld [vmem:[#allocation2 + $0x38] sm:$0xff]
    %v134 = vld [vmem:[#allocation2 + $0x40] sm:$0xff]
    %v135 = vld [vmem:[#allocation2 + $0x48] sm:$0xff]
    %v136 = vld [vmem:[#allocation2 + $0x50] sm:$0xff]
    %v137 = vld [vmem:[#allocation2 + $0x58] sm:$0xff]
    %v138 = vld [vmem:[#allocation2 + $0x60] sm:$0xff]
    %v139 = vld [vmem:[#allocation2 + $0x68] sm:$0xff]
    %v140 = vld [vmem:[#allocation2 + $0x70] sm:$0xff]
    %v141 = vld [vmem:[#allocation2 + $0x78] sm:$0xff]
    %v142 = vld [vmem:[%s4] sm:$0x1]
    %v144 = vlaneseq
    %v145 = vshrl.u32 %v144, 7
    %v146 = vsub.s32 0, %v145
    %v147 = vrot.slane %v142, %v146
    %149 = vmatprep.subr.mxu0 0.0
    %150 = vmatpush1.msra.mxu0 %v126
    %151 = vmatprep.subr.mxu0 0.0
    %152 = vmatpush1.msra.mxu0 %v127
    %153 = vmatprep.subr.mxu0 0.0
    %154 = vmatpush1.msra.mxu0 %v128
    %155 = vmatprep.subr.mxu0 0.0
    %156 = vmatpush1.msra.mxu0 %v129
    %157 = vmatprep.subr.mxu0 0.0
    %158 = vmatpush1.msra.mxu0 %v130
    %159 = vmatprep.subr.mxu0 0.0
    %160 = vmatpush1.msra.mxu0 %v131
    %161 = vmatprep.subr.mxu0 0.0
    %162 = vmatpush1.msra.mxu0 %v132
    %163 = vmatprep.subr.mxu0 0.0
    %164 = vmatpush1.msra.mxu0 %v133
    %165 = vmatprep.subr.mxu0 0.0
    %166 = vmatpush1.msra.mxu0 %v134
    %167 = vmatprep.subr.mxu0 0.0
    %168 = vmatpush1.msra.mxu0 %v135
    %169 = vmatprep.subr.mxu0 0.0
    %170 = vmatpush1.msra.mxu0 %v136
    %171 = vmatprep.subr.mxu0 0.0
    %172 = vmatpush1.msra.mxu0 %v137
    %173 = vmatprep.subr.mxu0 0.0
    %174 = vmatpush1.msra.mxu0 %v138
    %175 = vmatprep.subr.mxu0 0.0
    %176 = vmatpush1.msra.mxu0 %v139
    %177 = vmatprep.subr.mxu0 0.0
    %178 = vmatpush1.msra.mxu0 %v140
    %179 = vmatprep.subr.mxu0 0.0
    %180 = vmatpush1.msra.mxu0 %v141
    %181 = vmatprep.subr.mxu0 0.0
    %182 = vmatpush1.msra.mxu0 0.0
    %183 = vmatprep.subr.mxu0 0.0
    %184 = vmatpush1.msra.mxu0 0.0
    %185 = vmatprep.subr.mxu0 0.0
    %186 = vmatpush1.msra.mxu0 0.0
    %187 = vmatprep.subr.mxu0 0.0
    %188 = vmatpush1.msra.mxu0 0.0
    %189 = vmatprep.subr.mxu0 0.0
    %190 = vmatpush1.msra.mxu0 0.0
    %191 = vmatprep.subr.mxu0 0.0
    %192 = vmatpush1.msra.mxu0 0.0
    %193 = vmatprep.subr.mxu0 0.0
    %194 = vmatpush1.msra.mxu0 0.0
    %195 = vmatprep.subr.mxu0 0.0
    %196 = vmatpush1.msra.mxu0 0.0
    %197 = vmatprep.subr.mxu0 0.0
    %198 = vmatpush1.msra.mxu0 0.0
    %199 = vmatprep.subr.mxu0 0.0
    %200 = vmatpush1.msra.mxu0 0.0
    %201 = vmatprep.subr.mxu0 0.0
    %202 = vmatpush1.msra.mxu0 0.0
    %203 = vmatprep.subr.mxu0 0.0
    %204 = vmatpush1.msra.mxu0 0.0
    %205 = vmatprep.subr.mxu0 0.0
    %206 = vmatpush1.msra.mxu0 0.0
    %207 = vmatprep.subr.mxu0 0.0
    %208 = vmatpush1.msra.mxu0 0.0
    %209 = vmatprep.subr.mxu0 0.0
    %210 = vmatpush1.msra.mxu0 0.0
    %211 = vmatprep.subr.mxu0 0.0
    %212 = vmatpush1.msra.mxu0 0.0
    %213 = vmatprep.mubr.f32.mxu0 0.0
    %214 = vmatmul.mubr.f32.gmra.mrb[0].mxu0 %v125
    %v215 = vpop.f32.mrb[0].mxu0
    %v216 = vadd.f32 %v147, %v215
    %v217 = vpop.f32.mrb[0].mxu0
    %218 = vdwg.mxu0
    %v219 = vmax.f32 %v216, 0.0
    %s220 = scalar_lea.vmem [#allocation2], 128
    %v221 = vld [vmem:[%s220] sm:$0xff]
    %v222 = vld [vmem:[%s220 + $0x8] sm:$0xff]
    %v223 = vld [vmem:[%s220 + $0x10] sm:$0xff]
    %v224 = vld [vmem:[%s220 + $0x18] sm:$0xff]
    %v225 = vld [vmem:[%s220 + $0x20] sm:$0xff]
    %v226 = vld [vmem:[%s220 + $0x28] sm:$0xff]
    %v227 = vld [vmem:[%s220 + $0x30] sm:$0xff]
    %v228 = vld [vmem:[%s220 + $0x38] sm:$0xff]
    %v229 = vld [vmem:[%s220 + $0x40] sm:$0xff]
    %v230 = vld [vmem:[%s220 + $0x48] sm:$0xff]
    %v231 = vld [vmem:[%s220 + $0x50] sm:$0xff]
    %v232 = vld [vmem:[%s220 + $0x58] sm:$0xff]
    %v233 = vld [vmem:[%s220 + $0x60] sm:$0xff]
    %v234 = vld [vmem:[%s220 + $0x68] sm:$0xff]
    %v235 = vld [vmem:[%s220 + $0x70] sm:$0xff]
    %v236 = vld [vmem:[%s220 + $0x78] sm:$0xff]
    %s237 = scalar_lea.vmem %s4, 1
    %v238 = vld [vmem:[%s237] sm:$0x1]
    %v240 = vlaneseq
    %v241 = vshrl.u32 %v240, 7
    %v242 = vsub.s32 0, %v241
    %v243 = vrot.slane %v238, %v242
    %245 = vmatprep.subr.mxu0 0.0
    %246 = vmatpush1.msra.mxu0 %v221
    %247 = vmatprep.subr.mxu0 0.0
    %248 = vmatpush1.msra.mxu0 %v222
    %249 = vmatprep.subr.mxu0 0.0
    %250 = vmatpush1.msra.mxu0 %v223
    %251 = vmatprep.subr.mxu0 0.0
    %252 = vmatpush1.msra.mxu0 %v224
    %253 = vmatprep.subr.mxu0 0.0
    %254 = vmatpush1.msra.mxu0 %v225
    %255 = vmatprep.subr.mxu0 0.0
    %256 = vmatpush1.msra.mxu0 %v226
    %257 = vmatprep.subr.mxu0 0.0
    %258 = vmatpush1.msra.mxu0 %v227
    %259 = vmatprep.subr.mxu0 0.0
    %260 = vmatpush1.msra.mxu0 %v228
    %261 = vmatprep.subr.mxu0 0.0
    %262 = vmatpush1.msra.mxu0 %v229
    %263 = vmatprep.subr.mxu0 0.0
    %264 = vmatpush1.msra.mxu0 %v230
    %265 = vmatprep.subr.mxu0 0.0
    %266 = vmatpush1.msra.mxu0 %v231
    %267 = vmatprep.subr.mxu0 0.0
    %268 = vmatpush1.msra.mxu0 %v232
    %269 = vmatprep.subr.mxu0 0.0
    %270 = vmatpush1.msra.mxu0 %v233
    %271 = vmatprep.subr.mxu0 0.0
    %272 = vmatpush1.msra.mxu0 %v234
    %273 = vmatprep.subr.mxu0 0.0
    %274 = vmatpush1.msra.mxu0 %v235
    %275 = vmatprep.subr.mxu0 0.0
    %276 = vmatpush1.msra.mxu0 %v236
    %277 = vmatprep.subr.mxu0 0.0
    %278 = vmatpush1.msra.mxu0 0.0
    %279 = vmatprep.subr.mxu0 0.0
    %280 = vmatpush1.msra.mxu0 0.0
    %281 = vmatprep.subr.mxu0 0.0
    %282 = vmatpush1.msra.mxu0 0.0
    %283 = vmatprep.subr.mxu0 0.0
    %284 = vmatpush1.msra.mxu0 0.0
    %285 = vmatprep.subr.mxu0 0.0
    %286 = vmatpush1.msra.mxu0 0.0
    %287 = vmatprep.subr.mxu0 0.0
    %288 = vmatpush1.msra.mxu0 0.0
    %289 = vmatprep.subr.mxu0 0.0
    %290 = vmatpush1.msra.mxu0 0.0
    %291 = vmatprep.subr.mxu0 0.0
    %292 = vmatpush1.msra.mxu0 0.0
    %293 = vmatprep.subr.mxu0 0.0
    %294 = vmatpush1.msra.mxu0 0.0
    %295 = vmatprep.subr.mxu0 0.0
    %296 = vmatpush1.msra.mxu0 0.0
    %297 = vmatprep.subr.mxu0 0.0
    %298 = vmatpush1.msra.mxu0 0.0
    %299 = vmatprep.subr.mxu0 0.0
    %300 = vmatpush1.msra.mxu0 0.0
    %301 = vmatprep.subr.mxu0 0.0
    %302 = vmatpush1.msra.mxu0 0.0
    %303 = vmatprep.subr.mxu0 0.0
    %304 = vmatpush1.msra.mxu0 0.0
    %305 = vmatprep.subr.mxu0 0.0
    %306 = vmatpush1.msra.mxu0 0.0
    %307 = vmatprep.subr.mxu0 0.0
    %308 = vmatpush1.msra.mxu0 0.0
    %309 = vmatprep.mubr.f32.mxu0 0.0
    %310 = vmatmul.mubr.f32.gmra.mrb[0].mxu0 %v219
    %v311 = vpop.f32.mrb[0].mxu0
    %v312 = vadd.f32 %v243, %v311
    %v313 = vpop.f32.mrb[0].mxu0
    %314 = vdwg.mxu0
    %v315 = vmax.f32 %v312, 0.0
    %v316 = vld [vmem:[%s5] sm:$0xff]
    %v317 = vld [vmem:[%s5 + $0x8] sm:$0xff]
    %v318 = vld [vmem:[%s5 + $0x10] sm:$0xff]
    %v319 = vld [vmem:[%s5 + $0x18] sm:$0xff]
    %v320 = vld [vmem:[%s5 + $0x20] sm:$0xff]
    %v321 = vld [vmem:[%s5 + $0x28] sm:$0xff]
    %v322 = vld [vmem:[%s5 + $0x30] sm:$0xff]
    %v323 = vld [vmem:[%s5 + $0x38] sm:$0xff]
    %v324 = vld [vmem:[%s5 + $0x40] sm:$0xff]
    %v325 = vld [vmem:[%s5 + $0x48] sm:$0xff]
    %v326 = vld [vmem:[%s5 + $0x50] sm:$0xff]
    %v327 = vld [vmem:[%s5 + $0x58] sm:$0xff]
    %v328 = vld [vmem:[%s5 + $0x60] sm:$0xff]
    %v329 = vld [vmem:[%s5 + $0x68] sm:$0xff]
    %v330 = vld [vmem:[%s5 + $0x70] sm:$0xff]
    %v331 = vld [vmem:[%s5 + $0x78] sm:$0xff]
    %v332 = vld [vmem:[%s6] sm:$0x1]
    %v334 = vlaneseq
    %v335 = vshrl.u32 %v334, 7
    %v336 = vsub.s32 0, %v335
    %v337 = vrot.slane %v332, %v336
    %339 = vmatprep.subr.mxu0 0.0
    %340 = vmatpush1.msra.mxu0 %v316
    %341 = vmatprep.subr.mxu0 0.0
    %342 = vmatpush1.msra.mxu0 %v317
    %343 = vmatprep.subr.mxu0 0.0
    %344 = vmatpush1.msra.mxu0 %v318
    %345 = vmatprep.subr.mxu0 0.0
    %346 = vmatpush1.msra.mxu0 %v319
    %347 = vmatprep.subr.mxu0 0.0
    %348 = vmatpush1.msra.mxu0 %v320
    %349 = vmatprep.subr.mxu0 0.0
    %350 = vmatpush1.msra.mxu0 %v321
    %351 = vmatprep.subr.mxu0 0.0
    %352 = vmatpush1.msra.mxu0 %v322
    %353 = vmatprep.subr.mxu0 0.0
    %354 = vmatpush1.msra.mxu0 %v323
    %355 = vmatprep.subr.mxu0 0.0
    %356 = vmatpush1.msra.mxu0 %v324
    %357 = vmatprep.subr.mxu0 0.0
    %358 = vmatpush1.msra.mxu0 %v325
    %359 = vmatprep.subr.mxu0 0.0
    %360 = vmatpush1.msra.mxu0 %v326
    %361 = vmatprep.subr.mxu0 0.0
    %362 = vmatpush1.msra.mxu0 %v327
    %363 = vmatprep.subr.mxu0 0.0
    %364 = vmatpush1.msra.mxu0 %v328
    %365 = vmatprep.subr.mxu0 0.0
    %366 = vmatpush1.msra.mxu0 %v329
    %367 = vmatprep.subr.mxu0 0.0
    %368 = vmatpush1.msra.mxu0 %v330
    %369 = vmatprep.subr.mxu0 0.0
    %370 = vmatpush1.msra.mxu0 %v331
    %371 = vmatprep.subr.mxu0 0.0
    %372 = vmatpush1.msra.mxu0 0.0
    %373 = vmatprep.subr.mxu0 0.0
    %374 = vmatpush1.msra.mxu0 0.0
    %375 = vmatprep.subr.mxu0 0.0
    %376 = vmatpush1.msra.mxu0 0.0
    %377 = vmatprep.subr.mxu0 0.0
    %378 = vmatpush1.msra.mxu0 0.0
    %379 = vmatprep.subr.mxu0 0.0
    %380 = vmatpush1.msra.mxu0 0.0
    %381 = vmatprep.subr.mxu0 0.0
    %382 = vmatpush1.msra.mxu0 0.0
    %383 = vmatprep.subr.mxu0 0.0
    %384 = vmatpush1.msra.mxu0 0.0
    %385 = vmatprep.subr.mxu0 0.0
    %386 = vmatpush1.msra.mxu0 0.0
    %387 = vmatprep.subr.mxu0 0.0
    %388 = vmatpush1.msra.mxu0 0.0
    %389 = vmatprep.subr.mxu0 0.0
    %390 = vmatpush1.msra.mxu0 0.0
    %391 = vmatprep.subr.mxu0 0.0
    %392 = vmatpush1.msra.mxu0 0.0
    %393 = vmatprep.subr.mxu0 0.0
    %394 = vmatpush1.msra.mxu0 0.0
    %395 = vmatprep.subr.mxu0 0.0
    %396 = vmatpush1.msra.mxu0 0.0
    %397 = vmatprep.subr.mxu0 0.0
    %398 = vmatpush1.msra.mxu0 0.0
    %399 = vmatprep.subr.mxu0 0.0
    %400 = vmatpush1.msra.mxu0 0.0
    %401 = vmatprep.subr.mxu0 0.0
    %402 = vmatpush1.msra.mxu0 0.0
    %403 = vmatprep.mubr.f32.mxu0 0.0
    %404 = vmatmul.mubr.f32.gmra.mrb[0].mxu0 %v315
    %v405 = vpop.f32.mrb[0].mxu0
    %v406 = vadd.f32 %v337, %v405
    %v407 = vpop.f32.mrb[0].mxu0
    %408 = vdwg.mxu0
    %v409 = vmul.f32 %v406, 0.5
    %v410 = vtanh.pop %v409
    %v411 = vmul.f32 %v410, 2.0
    %vm412 = vcmask 58368
    %413 = vst.msk [vmem:[#allocation5] sm:$0x3] %vm412, %v411
    // Predicated region
    $region34: #{tpu_custom_call.1} parent=1 // pred_check
      _
    $region35: #{tpu_custom_call.1} parent=1 // pred_check_branch
      %415 = sbr.rel (0) target = $region37
    $region36: #{tpu_custom_call.1} parent=1 // pred_region
      %s417 = ssub.s32 32, 32
      %418 = vsyncadd [#allocation4], %s417
      %s420 = sshll.u32 [#allocation5], 4
      %s421 = int_to_ptr.vmem [resolvable:$true] %s420
      %423 = dma.vmem_to_hbm [thread:$0]  %s421, 32, %s7, [#allocation4]
    $region37: #{tpu_custom_call.1} parent=1 // pred_fallthru
      _
    // Predicated region
    $region38: #{tpu_custom_call.1} parent=1 // pred_check
      _
    $region39: #{tpu_custom_call.1} parent=1 // pred_check_branch
      %425 = sbr.rel (0) target = $region41
    $region40: #{tpu_custom_call.1} parent=1 // pred_region
      %426 = dma.done [#allocation4], 32
    $region41: #{tpu_custom_call.1} parent=1 // pred_fallthru
      _
    %427 = vsyncpa [#allocation3], 1
    %428 = vsyncpa [#allocation4], 1

</llo_original>
